<compile_context>
chip_gen: v7x
topology: tpu7x:2x2x1
jax: 0.10.0
libtpu: 0.0.40
codegen_flags: <defaults>
</compile_context>

<pallas_src>
import functools

import jax
import jax.numpy as jnp
from jax.experimental import pallas as pl
from jax.experimental.pallas import tpu as pltpu

LN_EPS = 1e-5  # torch.nn.LayerNorm default


def _layernorm(x, gamma, beta):
    # f32 elementwise math (v5e-friendly); x: (M, D), gamma/beta: (1, D).
    mu = jnp.mean(x, axis=-1, keepdims=True)
    var = jnp.mean((x - mu) ** 2, axis=-1, keepdims=True)
    return (x - mu) * jax.lax.rsqrt(var + LN_EPS) * gamma + beta


def _largest_divisor_leq(n, cap):
    cap = max(1, min(n, cap))
    for d in range(cap, 0, -1):
        if n % d == 0:
            return d
    return 1


# ----------------------------------------------------------------------------
# Kernel 1: patch-embedding linear + cls token + positional embedding.
# One grid step per batch tile; cls / patch rows written to disjoint slices of
# the (already token-padded) output — no concatenate.
# ----------------------------------------------------------------------------
def embed_kernel(patch_ref, w_ref, b_ref, cls_ref, pos_ref, out_ref):
    bt, n_p, p_dim = patch_ref.shape
    _, t_pad, d = out_ref.shape

    patches = patch_ref[...].reshape(bt * n_p, p_dim)
    emb = jnp.dot(patches.astype(jnp.bfloat16), w_ref[...],
                  preferred_element_type=jnp.float32) + b_ref[...]      # (bt*n_p, d) f32
    emb = emb.reshape(bt, n_p, d) + pos_ref[1:1 + n_p, :]               # + pos (patch rows)

    cls_row = cls_ref[...] + pos_ref[0:1, :]                            # (1, d)
    out_ref[:, 0:1, :] = jnp.broadcast_to(cls_row.reshape(1, 1, d), (bt, 1, d))
    out_ref[:, 1:1 + n_p, :] = emb
    if t_pad > 1 + n_p:  # zero the padded token rows (static check)
        out_ref[:, 1 + n_p:, :] = jnp.zeros((bt, t_pad - 1 - n_p, d), jnp.float32)


# ----------------------------------------------------------------------------
# Kernel 2: full transformer stack.  grid = (batch_tiles, depth).
# Activations stay resident in out_ref across the (arbitrary) depth axis;
# per-layer weights stream via the depth-indexed BlockSpecs.
# ----------------------------------------------------------------------------
def transformer_stack_kernel(x_ref, ln1g_ref, ln1b_ref, wqkv_ref, wo_ref, bo_ref,
                             ln2g_ref, ln2b_ref, w1_ref, b1_ref, w2_ref, b2_ref,
                             out_ref, *, heads, dim_head, n_valid):
    layer = pl.program_id(1)

    @pl.when(layer == 0)
    def _init():
        out_ref[...] = x_ref[...]                       # load residual stream once

    x = out_ref[...]                                    # (bt, T, D) f32, VMEM-resident
    bt, t_pad, d = x.shape
    m = bt * t_pad
    scale = dim_head ** (-0.5)

    x2 = x.reshape(m, d)

    # ---------------- attention branch (PreNorm) ----------------
    xn = _layernorm(x2, ln1g_ref[0], ln1b_ref[0])                       # f32 (m, d)

    # Batched q/k/v projection over z = 3*heads head-blocked weights:
    #   qkv[z] = xn @ W_qkv[z]  with W_qkv[z] of shape (d, dim_head).
    xn_b = jnp.broadcast_to(xn.astype(jnp.bfloat16)[None], (3 * heads, m, d))
    qkv = jnp.einsum('zmd,zde->zme', xn_b, wqkv_ref[0],
                     preferred_element_type=jnp.float32)                # (3*heads, m, dh)

    # (heads, bt*T, dh) -> (heads*bt, T, dh): leading-dims-only reshapes.
    q = (qkv[0:heads] * scale).reshape(heads * bt, t_pad, dim_head)     # scale folded into q
    k = qkv[heads:2 * heads].reshape(heads * bt, t_pad, dim_head)
    v = qkv[2 * heads:3 * heads].reshape(heads * bt, t_pad, dim_head)

    dots = jnp.einsum('zqd,zkd->zqk', q.astype(jnp.bfloat16), k.astype(jnp.bfloat16),
                      preferred_element_type=jnp.float32)               # (Z, T, T) f32
    if n_valid < t_pad:  # mask padded key positions
        key_idx = jax.lax.broadcasted_iota(jnp.int32, (1, 1, t_pad), 2)
        dots = jnp.where(key_idx < n_valid, dots, -1e30)

    mmax = jnp.max(dots, axis=-1, keepdims=True)
    p = jnp.exp(dots - mmax)
    attn = p * pl.reciprocal(jnp.sum(p, axis=-1, keepdims=True), approx=True)

    ctx = jnp.einsum('zqk,zkd->zqd', attn.astype(jnp.bfloat16), v.astype(jnp.bfloat16),
                     preferred_element_type=jnp.float32)                # (Z, T, dh)
    ctx = ctx.reshape(heads, m, dim_head)                               # (heads, M, dh)

    # Output projection with the head-concat folded in: sum_h ctx_h @ W_o[h].
    proj = jnp.einsum('hmd,hde->hme', ctx.astype(jnp.bfloat16), wo_ref[0],
                      preferred_element_type=jnp.float32)               # (heads, M, D)
    x2 = x2 + jnp.sum(proj, axis=0) + bo_ref[0]                         # residual

    # ---------------- feed-forward branch (PreNorm) ----------------
    xn2 = _layernorm(x2, ln2g_ref[0], ln2b_ref[0])
    h1 = jnp.dot(xn2.astype(jnp.bfloat16), w1_ref[0],
                 preferred_element_type=jnp.float32) + b1_ref[0]
    h1 = jax.nn.gelu(h1, approximate=False)                             # exact erf GELU, f32
    ff = jnp.dot(h1.astype(jnp.bfloat16), w2_ref[0],
                 preferred_element_type=jnp.float32) + b2_ref[0]
    x2 = x2 + ff                                                        # residual

    out_ref[...] = x2.reshape(bt, t_pad, d)


# ----------------------------------------------------------------------------
# Kernel 3: classification head — LayerNorm + Linear (lane-dense padded classes).
# ----------------------------------------------------------------------------
def head_kernel(x_ref, lng_ref, lnb_ref, w_ref, b_ref, out_ref):
    xn = _layernorm(x_ref[...], lng_ref[...], lnb_ref[...])
    out_ref[...] = jnp.dot(xn.astype(jnp.bfloat16), w_ref[...],
                           preferred_element_type=jnp.float32) + b_ref[...]


# ----------------------------------------------------------------------------
# Parameters (f32 canonical; matmul weights are cast to bf16 in the wrapper).
# Linear weights are stored pre-transposed: (in_features, out_features).
# ----------------------------------------------------------------------------
def init_vit_params(key, *, image_height, image_width, channels, num_classes,
                    dim, depth, heads, dim_head, mlp_dim):
    p = 8
    num_patches = (image_height // p) * (image_width // p)
    patch_dim = channels * p * p
    inner = heads * dim_head

    def nrm(k, shape, scale=0.02):
        return scale * jax.random.normal(k, shape, dtype=jnp.float32)

    keys = jax.random.split(key, 8)
    lkeys = jax.random.split(keys[7], 4)
    return {
        "w_pe": nrm(keys[0], (patch_dim, dim)),
        "b_pe": jnp.zeros((1, dim), jnp.float32),
        "cls": nrm(keys[1], (1, dim), scale=1.0),
        "pos": nrm(keys[2], (num_patches + 1, dim), scale=1.0),
        "head_ln_g": jnp.ones((1, dim), jnp.float32),
        "head_ln_b": jnp.zeros((1, dim), jnp.float32),
        "w_head": nrm(keys[3], (dim, num_classes)),
        "b_head": jnp.zeros((1, num_classes), jnp.float32),
        "layers": {  # stacked along depth
            "ln1_g": jnp.ones((depth, 1, dim), jnp.float32),
            "ln1_b": jnp.zeros((depth, 1, dim), jnp.float32),
            "w_qkv": nrm(lkeys[0], (depth, dim, 3 * inner)),
            "w_o": nrm(lkeys[1], (depth, inner, dim)),
            "b_o": jnp.zeros((depth, 1, dim), jnp.float32),
            "ln2_g": jnp.ones((depth, 1, dim), jnp.float32),
            "ln2_b": jnp.zeros((depth, 1, dim), jnp.float32),
            "w1": nrm(lkeys[2], (depth, dim, mlp_dim)),
            "b1": jnp.zeros((depth, 1, mlp_dim), jnp.float32),
            "w2": nrm(lkeys[3], (depth, mlp_dim, dim)),
            "b2": jnp.zeros((depth, 1, dim), jnp.float32),
        },
    }


def _layer_weight_spec(arr):
    """BlockSpec streaming one layer slice per depth grid step (grid=(bt, depth))."""
    nd = arr.ndim - 1
    block = (1,) + tuple(arr.shape[1:])
    return pl.BlockSpec(block, lambda bt, l, _nd=nd: (l,) + (0,) * _nd)


# ----------------------------------------------------------------------------
# Forward pass wrapper (glue: patch rearrange, weight packing, pooling).
# ----------------------------------------------------------------------------
def vit_forward(img, params, *, heads, dim_head, pool="cls"):
    B, C, H, W = img.shape
    p = 8
    hh, ww = H // p, W // p
    N = hh * ww
    patch_dim = C * p * p
    D = params["pos"].shape[-1]
    Ntok = N + 1
    T = ((Ntok + 7) // 8) * 8                       # token dim padded to sublane multiple
    L = params["layers"]
    depth = L["w_qkv"].shape[0]
    num_classes = params["w_head"].shape[-1]

    b_tile = _largest_divisor_leq(B, max(1, 256 // T))   # ~256 rows per tile when B is large
    n_bt = B // b_tile

    # Rearrange 'b c (h p1) (w p2) -> b (h w) (p1 p2 c)'  (glue, plain JAX).
    patches = (img.reshape(B, C, hh, p, ww, p)
                  .transpose(0, 2, 4, 3, 5, 1)
                  .reshape(B, N, patch_dim)).astype(jnp.float32)

    pos_pad = jnp.zeros((T, D), jnp.float32).at[:Ntok].set(params["pos"])

    # --- patch embedding + cls + positional embedding -------------------------
    x = pl.pallas_call(
        embed_kernel,
        out_shape=jax.ShapeDtypeStruct((B, T, D), jnp.float32),
        grid=(n_bt,),
        in_specs=[
            pl.BlockSpec((b_tile, N, patch_dim), lambda b: (b, 0, 0)),
            pl.BlockSpec((patch_dim, D), lambda b: (0, 0)),
            pl.BlockSpec((1, D), lambda b: (0, 0)),
            pl.BlockSpec((1, D), lambda b: (0, 0)),
            pl.BlockSpec((T, D), lambda b: (0, 0)),
        ],
        out_specs=pl.BlockSpec((b_tile, T, D), lambda b: (b, 0, 0)),
        compiler_params=pltpu.CompilerParams(dimension_semantics=("parallel",)),
    )(patches, params["w_pe"].astype(jnp.bfloat16), params["b_pe"],
      params["cls"], pos_pad)

    # --- pack per-layer weights: head-blocked, bf16 ----------------------------
    # w_qkv: (depth, D, 3*inner) -> (depth, 3*heads, D, dim_head), z = which*heads + h.
    w_qkv_r = (L["w_qkv"].reshape(depth, D, 3, heads, dim_head)
               .transpose(0, 2, 3, 1, 4)
               .reshape(depth, 3 * heads, D, dim_head)
               .astype(jnp.bfloat16))
    w_o_r = L["w_o"].reshape(depth, heads, dim_head, D).astype(jnp.bfloat16)
    w1_r = L["w1"].astype(jnp.bfloat16)
    w2_r = L["w2"].astype(jnp.bfloat16)

    trans_kernel = functools.partial(transformer_stack_kernel,
                                     heads=heads, dim_head=dim_head, n_valid=Ntok)

    # --- fused transformer stack: activations resident, weights streamed ------
    x = pl.pallas_call(
        trans_kernel,
        out_shape=jax.ShapeDtypeStruct((B, T, D), jnp.float32),
        grid=(n_bt, depth),
        in_specs=[
            pl.BlockSpec((b_tile, T, D), lambda bt, l: (bt, 0, 0)),
            _layer_weight_spec(L["ln1_g"]), _layer_weight_spec(L["ln1_b"]),
            _layer_weight_spec(w_qkv_r),
            _layer_weight_spec(w_o_r), _layer_weight_spec(L["b_o"]),
            _layer_weight_spec(L["ln2_g"]), _layer_weight_spec(L["ln2_b"]),
            _layer_weight_spec(w1_r), _layer_weight_spec(L["b1"]),
            _layer_weight_spec(w2_r), _layer_weight_spec(L["b2"]),
        ],
        out_specs=pl.BlockSpec((b_tile, T, D), lambda bt, l: (bt, 0, 0)),
        compiler_params=pltpu.CompilerParams(
            dimension_semantics=("parallel", "arbitrary"),
            vmem_limit_bytes=64 * 1024 * 1024),  # tune per generation (<= physical VMEM)
    )(x, L["ln1_g"], L["ln1_b"], w_qkv_r, w_o_r, L["b_o"],
      L["ln2_g"], L["ln2_b"], w1_r, L["b1"], w2_r, L["b2"])

    # --- pool (glue; padded token rows excluded) -------------------------------
    x_pooled = x[:, :Ntok, :].mean(axis=1) if pool == "mean" else x[:, 0, :]

    # --- classification head (classes padded to lane-dense 128 multiple) ------
    C_pad = ((num_classes + 127) // 128) * 128
    w_head_p = (jnp.zeros((D, C_pad), jnp.float32)
                .at[:, :num_classes].set(params["w_head"]).astype(jnp.bfloat16))
    b_head_p = jnp.zeros((1, C_pad), jnp.float32).at[:, :num_classes].set(params["b_head"])
    bm = _largest_divisor_leq(B, 256)
    logits = pl.pallas_call(
        head_kernel,
        out_shape=jax.ShapeDtypeStruct((B, C_pad), jnp.float32),
        grid=(B // bm,),
        in_specs=[
            pl.BlockSpec((bm, D), lambda b: (b, 0)),
            pl.BlockSpec((1, D), lambda b: (0, 0)),
            pl.BlockSpec((1, D), lambda b: (0, 0)),
            pl.BlockSpec((D, C_pad), lambda b: (0, 0)),
            pl.BlockSpec((1, C_pad), lambda b: (0, 0)),
        ],
        out_specs=pl.BlockSpec((bm, C_pad), lambda b: (b, 0)),
        compiler_params=pltpu.CompilerParams(dimension_semantics=("parallel",)),
    )(x_pooled, params["head_ln_g"], params["head_ln_b"], w_head_p, b_head_p)
    return logits[:, :num_classes]


if __name__ == "__main__":
    # Small config consistent with the module: 16x16 single-channel image,
    # 8x8 patches -> 4 patches (+cls = 5 tokens, padded to 8),
    # dim=32, depth=2, heads=2, dim_head=16, mlp_dim=64, 10 classes.
    B, C, H, W = 2, 1, 16, 16
    dim, depth, heads, dim_head, mlp_dim, num_classes = 32, 2, 2, 16, 64, 10

    key = jax.random.PRNGKey(0)
    k_img, k_par = jax.random.split(key)
    img = jax.random.normal(k_img, (B, C, H, W), dtype=jnp.float32)

    params = init_vit_params(
        k_par, image_height=H, image_width=W, channels=C, num_classes=num_classes,
        dim=dim, depth=depth, heads=heads, dim_head=dim_head, mlp_dim=mlp_dim)

    logits = vit_forward(img, params, heads=heads, dim_head=dim_head, pool="cls")
    logits = jax.block_until_ready(logits)

    assert logits.shape == (B, num_classes), logits.shape
    assert bool(jnp.all(jnp.isfinite(logits)))
    print("KERNEL_OK")
</pallas_src>

<mosaic_0001>
module attributes {stable_mosaic.version = 11 : i64} {
  func.func @embed_kernel(%arg0: i32, %arg1: memref<2x4x64xf32, #tpu.memory_space<vmem>>, %arg2: memref<64x32xbf16, #tpu.memory_space<vmem>>, %arg3: memref<1x32xf32, #tpu.memory_space<vmem>>, %arg4: memref<1x32xf32, #tpu.memory_space<vmem>>, %arg5: memref<8x32xf32, #tpu.memory_space<vmem>>, %arg6: memref<2x8x32xf32, #tpu.memory_space<vmem>>) attributes {dimension_semantics = [#tpu.dimension_semantics<parallel>], iteration_bounds = array<i64: 1>, scalar_prefetch = 0 : i64, scratch_operands = 0 : i64, tpu.core_type = #tpu.core_type<tc>, window_params = [{transform_indices = @transform_0, window_bounds = array<i64: 2, 4, 64>}, {pipeline_mode = #tpu.pipeline_mode<synchronous>, transform_indices = @transform_1, window_bounds = array<i64: 64, 32>}, {pipeline_mode = #tpu.pipeline_mode<synchronous>, transform_indices = @transform_2, window_bounds = array<i64: 1, 32>}, {pipeline_mode = #tpu.pipeline_mode<synchronous>, transform_indices = @transform_3, window_bounds = array<i64: 1, 32>}, {pipeline_mode = #tpu.pipeline_mode<synchronous>, transform_indices = @transform_4, window_bounds = array<i64: 8, 32>}, {transform_indices = @transform_5, window_bounds = array<i64: 2, 8, 32>}]} {
    %c0 = arith.constant 0 : index
    %c0_0 = arith.constant 0 : index
    %c0_1 = arith.constant 0 : index
    %0 = vector.load %arg1[%c0, %c0_0, %c0_1] : memref<2x4x64xf32, #tpu.memory_space<vmem>>, vector<2x4x64xf32>
    %1 = vector.shape_cast %0 : vector<2x4x64xf32> to vector<8x64xf32>
    %2 = arith.truncf %1 : vector<8x64xf32> to vector<8x64xbf16>
    %c0_2 = arith.constant 0 : index
    %c0_3 = arith.constant 0 : index
    %3 = vector.load %arg2[%c0_2, %c0_3] : memref<64x32xbf16, #tpu.memory_space<vmem>>, vector<64x32xbf16>
    %cst = arith.constant dense<0.000000e+00> : vector<8x32xf32>
    %4 = tpu.matmul %2, %3, %cst {dimension_numbers = #tpu.dot_dimension_numbers<[1], [0], [0], [1], [0, 0, 1, 1], [], []>} : vector<8x64xbf16>, vector<64x32xbf16>, vector<8x32xf32> -> vector<8x32xf32>
    %c0_4 = arith.constant 0 : index
    %c0_5 = arith.constant 0 : index
    %5 = vector.load %arg3[%c0_4, %c0_5] : memref<1x32xf32, #tpu.memory_space<vmem>>, vector<1x32xf32>
    %6 = vector.broadcast %5 : vector<1x32xf32> to vector<8x32xf32>
    %7 = arith.addf %4, %6 : vector<8x32xf32>
    %8 = vector.shape_cast %7 : vector<8x32xf32> to vector<2x4x32xf32>
    %c1 = arith.constant 1 : index
    %c0_6 = arith.constant 0 : index
    %9 = vector.load %arg5[%c1, %c0_6] : memref<8x32xf32, #tpu.memory_space<vmem>>, vector<4x32xf32>
    %10 = vector.shape_cast %9 : vector<4x32xf32> to vector<1x4x32xf32>
    %11 = vector.broadcast %10 : vector<1x4x32xf32> to vector<2x4x32xf32>
    %12 = arith.addf %8, %11 : vector<2x4x32xf32>
    %c0_7 = arith.constant 0 : index
    %c0_8 = arith.constant 0 : index
    %13 = vector.load %arg4[%c0_7, %c0_8] : memref<1x32xf32, #tpu.memory_space<vmem>>, vector<1x32xf32>
    %c0_9 = arith.constant 0 : index
    %c0_10 = arith.constant 0 : index
    %14 = vector.load %arg5[%c0_9, %c0_10] : memref<8x32xf32, #tpu.memory_space<vmem>>, vector<1x32xf32>
    %15 = arith.addf %13, %14 : vector<1x32xf32>
    %16 = vector.shape_cast %15 : vector<1x32xf32> to vector<1x1x32xf32>
    %17 = vector.shape_cast %16 : vector<1x1x32xf32> to vector<1x1x32xf32>
    %18 = vector.broadcast %17 : vector<1x1x32xf32> to vector<2x1x32xf32>
    %c0_11 = arith.constant 0 : index
    %c0_12 = arith.constant 0 : index
    %c0_13 = arith.constant 0 : index
    %19 = vector.load %arg6[%c0_11, %c0_12, %c0_13] : memref<2x8x32xf32, #tpu.memory_space<vmem>>, vector<2x1x32xf32>
    tpu.vector_store %arg6[%c0_11, %c0_12, %c0_13], %18 {strides = array<i32>} : memref<2x8x32xf32, #tpu.memory_space<vmem>>, vector<2x1x32xf32>,
    %c0_14 = arith.constant 0 : index
    %c1_15 = arith.constant 1 : index
    %c0_16 = arith.constant 0 : index
    %20 = vector.load %arg6[%c0_14, %c1_15, %c0_16] : memref<2x8x32xf32, #tpu.memory_space<vmem>>, vector<2x4x32xf32>
    tpu.vector_store %arg6[%c0_14, %c1_15, %c0_16], %12 {strides = array<i32>} : memref<2x8x32xf32, #tpu.memory_space<vmem>>, vector<2x4x32xf32>,
    %cst_17 = arith.constant 0.000000e+00 : f32
    %21 = vector.broadcast %cst_17 : f32 to vector<2x3x32xf32>
    %c0_18 = arith.constant 0 : index
    %c5 = arith.constant 5 : index
    %c0_19 = arith.constant 0 : index
    %22 = vector.load %arg6[%c0_18, %c5, %c0_19] : memref<2x8x32xf32, #tpu.memory_space<vmem>>, vector<2x3x32xf32>
    tpu.vector_store %arg6[%c0_18, %c5, %c0_19], %21 {strides = array<i32>} : memref<2x8x32xf32, #tpu.memory_space<vmem>>, vector<2x3x32xf32>,
    return
  }
  func.func @transform_0(%arg0: i32) -> (i32, i32, i32) {
    %c0_i32 = arith.constant 0 : i32
    %c0_i32_0 = arith.constant 0 : i32
    %c0_i32_1 = arith.constant 0 : i32
    return %arg0, %c0_i32, %c0_i32_0 : i32, i32, i32
  }
  func.func @transform_1(%arg0: i32) -> (i32, i32) {
    %c0_i32 = arith.constant 0 : i32
    %c0_i32_0 = arith.constant 0 : i32
    %c0_i32_1 = arith.constant 0 : i32
    return %c0_i32, %c0_i32_0 : i32, i32
  }
  func.func @transform_2(%arg0: i32) -> (i32, i32) {
    %c0_i32 = arith.constant 0 : i32
    %c0_i32_0 = arith.constant 0 : i32
    %c0_i32_1 = arith.constant 0 : i32
    return %c0_i32, %c0_i32_0 : i32, i32
  }
  func.func @transform_3(%arg0: i32) -> (i32, i32) {
    %c0_i32 = arith.constant 0 : i32
    %c0_i32_0 = arith.constant 0 : i32
    %c0_i32_1 = arith.constant 0 : i32
    return %c0_i32, %c0_i32_0 : i32, i32
  }
  func.func @transform_4(%arg0: i32) -> (i32, i32) {
    %c0_i32 = arith.constant 0 : i32
    %c0_i32_0 = arith.constant 0 : i32
    %c0_i32_1 = arith.constant 0 : i32
    return %c0_i32, %c0_i32_0 : i32, i32
  }
  func.func @transform_5(%arg0: i32) -> (i32, i32, i32) {
    %c0_i32 = arith.constant 0 : i32
    %c0_i32_0 = arith.constant 0 : i32
    %c0_i32_1 = arith.constant 0 : i32
    return %arg0, %c0_i32, %c0_i32_0 : i32, i32, i32
  }
}

</mosaic_0001>

<llo_original>
// kernel: tpu_custom_call.1
$region0: #{tpu_custom_call.1}
  #allocation0 [shape = 'u32[]', space=smem, size = 0x4, offset = 0x4, fixed_abs, tag = 'smem constant byte address 0x4 - core index']
  #allocation1 [shape = 'u32[144,128]{1,0:T(1,128)}', space=vmem, size = 0x12000, scoped, tag = 'internal scratch']
  %s0 = inlined_call_operand.vmem [shape: f32[2,4,64], index: 0, kind: input, shape index: {}]
  %s1 = inlined_call_operand.vmem [shape: bf16[64,32], index: 1, kind: input, shape index: {}]
  %s2 = inlined_call_operand.vmem [shape: f32[1,32], index: 2, kind: input, shape index: {}]
  %s3 = inlined_call_operand.vmem [shape: f32[1,32], index: 3, kind: input, shape index: {}]
  %s4 = inlined_call_operand.vmem [shape: f32[8,32], index: 4, kind: input, shape index: {}]
  %s5 = inlined_call_operand.hbm [shape: f32[2,8,32], index: 5, kind: output, shape index: {}]
  %s6 = sld [smem:[#allocation0]]
  $region30: #{tpu_custom_call.1} parent=0
    _
  %s8 = ssub.s32 1, %s6
  %s9 = scalar_select 0, %s8, %s6
  $region1: #{tpu_custom_call.1} parent=0
    #allocation2 [shape = 'u8[8192]{0}', space=vmem, size = 0x2000, scoped, tag = 'output window, operand 0, single buffered']
    #allocation3 [shape = 's32[1]{0}', space=sflag, size = 0x4, scoped, tag = 'scoped memory for tpu_custom_call.1']
    %10 = vsyncpa [#allocation3], 0
    // Predicated region
    $region2: #{tpu_custom_call.1} parent=1 // pred_check
      _
    $region3: #{tpu_custom_call.1} parent=1 // pred_check_branch
      %12 = sbr.rel (0) target = $region5
    $region4: #{tpu_custom_call.1} parent=1 // pred_region
      _
    $region5: #{tpu_custom_call.1} parent=1 // pred_fallthru
      _
    // Predicated region
    $region6: #{tpu_custom_call.1} parent=1 // pred_check
      _
    $region7: #{tpu_custom_call.1} parent=1 // pred_check_branch
      %14 = sbr.rel (0) target = $region9
    $region8: #{tpu_custom_call.1} parent=1 // pred_region
      _
    $region9: #{tpu_custom_call.1} parent=1 // pred_fallthru
      _
    // Predicated region
    $region10: #{tpu_custom_call.1} parent=1 // pred_check
      _
    $region11: #{tpu_custom_call.1} parent=1 // pred_check_branch
      %16 = sbr.rel (0) target = $region13
    $region12: #{tpu_custom_call.1} parent=1 // pred_region
      _
    $region13: #{tpu_custom_call.1} parent=1 // pred_fallthru
      _
    // Predicated region
    $region14: #{tpu_custom_call.1} parent=1 // pred_check
      _
    $region15: #{tpu_custom_call.1} parent=1 // pred_check_branch
      %18 = sbr.rel (0) target = $region17
    $region16: #{tpu_custom_call.1} parent=1 // pred_region
      _
    $region17: #{tpu_custom_call.1} parent=1 // pred_fallthru
      _
    // Predicated region
    $region18: #{tpu_custom_call.1} parent=1 // pred_check
      _
    $region19: #{tpu_custom_call.1} parent=1 // pred_check_branch
      %20 = sbr.rel (0) target = $region21
    $region20: #{tpu_custom_call.1} parent=1 // pred_region
      _
    $region21: #{tpu_custom_call.1} parent=1 // pred_fallthru
      _
    %v22 = vld [vmem:[%s0] sm:$0xf]
    %v23 = vld [vmem:[%s0 + $0x4] sm:$0xf]
    %v26 = vcombine.low %v22, %v23
    %v28 = vpack.c.bf16 %v26, %v26
    %v29 = vld [vmem:[%s1] sm:$0xf]
    %v30 = vld [vmem:[%s1 + $0x4] sm:$0xf]
    %v31 = vld [vmem:[%s1 + $0x8] sm:$0xf]
    %v32 = vld [vmem:[%s1 + $0xc] sm:$0xf]
    %v33 = vld [vmem:[%s1 + $0x10] sm:$0xf]
    %v34 = vld [vmem:[%s1 + $0x14] sm:$0xf]
    %v35 = vld [vmem:[%s1 + $0x18] sm:$0xf]
    %v36 = vld [vmem:[%s1 + $0x1c] sm:$0xf]
    %v37 = vld [vmem:[%s2] sm:$0x1]
    %v39 = vlaneseq
    %v40 = vshrl.u32 %v39, 7
    %v41 = vsub.s32 0, %v40
    %v42 = vrot.slane %v37, %v41
    %v52 = vunpack.c.l.b16 %v29
    %v53 = vunpack.c.l.b16 %v30
    %v54 = vunpack.c.l.b16 %v31
    %v55 = vunpack.c.l.b16 %v32
    %v56 = vunpack.c.l.b16 %v33
    %v57 = vunpack.c.l.b16 %v34
    %v58 = vunpack.c.l.b16 %v35
    %v59 = vunpack.c.l.b16 %v36
    %v60 = vpack.c.b16 %v53, %v52
    %v61 = vpack.c.b16 %v55, %v54
    %v62 = vpack.c.b16 %v57, %v56
    %v63 = vpack.c.b16 %v59, %v58
    %vm68 = vcmask 523264
    %v70 = vsel %vm68, %v28, 0
    %72 = vmatprep.subr.bf16.mxu0 0
    %73 = vmatpush1.bf16.msra.mxu0 %v60
    %74 = vmatprep.subr.bf16.mxu0 0
    %75 = vmatpush1.bf16.msra.mxu0 %v61
    %76 = vmatprep.subr.bf16.mxu0 0
    %77 = vmatpush1.bf16.msra.mxu0 %v62
    %78 = vmatprep.subr.bf16.mxu0 0
    %79 = vmatpush1.bf16.msra.mxu0 %v63
    %80 = vmatprep.subr.bf16.mxu0 0
    %81 = vmatpush1.bf16.msra.mxu0 0
    %82 = vmatprep.subr.bf16.mxu0 0
    %83 = vmatpush1.bf16.msra.mxu0 0
    %84 = vmatprep.subr.bf16.mxu0 0
    %85 = vmatpush1.bf16.msra.mxu0 0
    %86 = vmatprep.subr.bf16.mxu0 0
    %87 = vmatpush1.bf16.msra.mxu0 0
    %88 = vmatprep.subr.bf16.mxu0 0
    %89 = vmatpush1.bf16.msra.mxu0 0
    %90 = vmatprep.subr.bf16.mxu0 0
    %91 = vmatpush1.bf16.msra.mxu0 0
    %92 = vmatprep.subr.bf16.mxu0 0
    %93 = vmatpush1.bf16.msra.mxu0 0
    %94 = vmatprep.subr.bf16.mxu0 0
    %95 = vmatpush1.bf16.msra.mxu0 0
    %96 = vmatprep.subr.bf16.mxu0 0
    %97 = vmatpush1.bf16.msra.mxu0 0
    %98 = vmatprep.subr.bf16.mxu0 0
    %99 = vmatpush1.bf16.msra.mxu0 0
    %100 = vmatprep.subr.bf16.mxu0 0
    %101 = vmatpush1.bf16.msra.mxu0 0
    %102 = vmatprep.subr.bf16.mxu0 0
    %103 = vmatpush1.bf16.msra.mxu0 0
    %104 = vmatprep.mubr.bf16.mxu0 0
    %105 = vmatmul.mubr.bf16.gmra.mrb[0].mxu0 %v70
    %v106 = vpop.f32.mrb[0].mxu0
    %v107 = vadd.f32 %v42, %v106
    %v108 = vpop.f32.mrb[0].mxu0
    %v109 = vpop.f32.mrb[0].mxu0
    %v110 = vpop.f32.mrb[0].mxu0
    %111 = vdwg.mxu0
    %v113 = vcombine.high %v107, %v107
    %v115 = vld [vmem:[%s4 + $0x1] sm:$0xf]
    %v116 = vadd.f32 %v107, %v115
    %v117 = vadd.f32 %v113, %v115
    %v118 = vld [vmem:[%s3] sm:$0x1]
    %v119 = vld [vmem:[%s4] sm:$0x1]
    %v120 = vadd.f32 %v118, %v119
    %vm121 = vcmask 253952
    %122 = vst.msk [vmem:[#allocation2] sm:$0x1] %vm121, %v120
    %123 = vst.msk [vmem:[#allocation2 + $0x8] sm:$0x1] %vm121, %v120
    %vm124 = vcmask 257024
    %125 = vst.msk [vmem:[#allocation2 + $0x1] sm:$0xf] %vm124, %v116
    %126 = vst.msk [vmem:[#allocation2 + $0x9] sm:$0xf] %vm124, %v117
    %vm127 = vcmask 256000
    %128 = vst.msk [vmem:[#allocation2 + $0x5] sm:$0x7] %vm127, 0.0
    %129 = vst.msk [vmem:[#allocation2 + $0xd] sm:$0x7] %vm127, 0.0
    // Predicated region
    $region22: #{tpu_custom_call.1} parent=1 // pred_check
      _
    $region23: #{tpu_custom_call.1} parent=1 // pred_check_branch
      %131 = sbr.rel (0) target = $region25
    $region24: #{tpu_custom_call.1} parent=1 // pred_region
      %s133 = ssub.s32 256, 256
      %134 = vsyncadd [#allocation3], %s133
      %s135 = sshll.u32 [#allocation2], 4
      %s136 = int_to_ptr.vmem [resolvable:$true] %s135
      %141 = dma.vmem_to_hbm [thread:$0]  %s136, 256, %s5, [#allocation3], 128, 128, 8
    $region25: #{tpu_custom_call.1} parent=1 // pred_fallthru
      _
    // Predicated region
    $region26: #{tpu_custom_call.1} parent=1 // pred_check
      _
    $region27: #{tpu_custom_call.1} parent=1 // pred_check_branch
      %143 = sbr.rel (0) target = $region29
    $region28: #{tpu_custom_call.1} parent=1 // pred_region
      %144 = dma.done [#allocation3], 256
    $region29: #{tpu_custom_call.1} parent=1 // pred_fallthru
      _
    %145 = vsyncpa [#allocation3], 1

</llo_original>
